<compile_context>
chip_gen: v5e
topology: v5e:2x2
jax: 0.10.0
libtpu: 0.0.40
codegen_flags: <defaults>
</compile_context>

<pallas_src>
import math

import jax
import jax.numpy as jnp
from jax.experimental import pallas as pl
from jax.experimental.pallas import tpu as pltpu

# ---------------- config (small, consistent with the module) ----------------
BATCH = 2
SEQ = 8
HIDDEN = 32
NUM_HEADS = 4
NUM_KV_HEADS = 2
HEAD_DIM = HIDDEN // NUM_HEADS          # 8
N_REP = NUM_HEADS // NUM_KV_HEADS       # 2  (exercises repeat_kv / GQA)
ROPE_BASE = 10000.0
MAX_POS = 2048


# ------------------------------ Pallas kernel -------------------------------
def _attn_kernel(x_ref, cos_ref, sin_ref, wq_ref, wk_ref, wv_ref, wo_ref,
                 out_ref):
    # Per grid step (one batch element):
    #   x_ref   : (S, H)            bf16 tokens
    #   cos/sin : (S, D)            f32 RoPE tables gathered at position_ids
    #   wq_ref  : (nH,  H, D)       bf16, 1/sqrt(D) pre-folded
    #   wk_ref  : (nKV, H, D)       bf16
    #   wv_ref  : (nKV, H, D)       bf16
    #   wo_ref  : (nH,  D, H)       bf16
    #   out_ref : (S, H)            f32
    f32 = jnp.float32
    bf16 = jnp.bfloat16
    S, D, half = SEQ, HEAD_DIM, HEAD_DIM // 2

    x = x_ref[...]                                   # (S, H) bf16
    cos = cos_ref[...]                               # (S, D) f32
    sin = sin_ref[...]                               # (S, D) f32

    # rotate_half as a tiny constant (D, D) rotation, built in-kernel from
    # iota (no extra HBM input, no duplicated projection weights):
    #   rotate_half(t)[:, j] = -t[:, j+half] (j < half) ; t[:, j-half] (j >= half)
    # i.e. (t @ R) with R[j+half, j] = -1 and R[j-half, j] = +1.
    rr = jax.lax.broadcasted_iota(jnp.int32, (D, D), 0)
    cc = jax.lax.broadcasted_iota(jnp.int32, (D, D), 1)
    rot = (jnp.where(rr == cc + half, -1.0, 0.0) +
           jnp.where(rr + half == cc, 1.0, 0.0)).astype(f32)

    def rope(t):                                     # t: (S, D) f32
        return t * cos + jnp.dot(t, rot, preferred_element_type=f32) * sin

    # Causal additive mask generated in-kernel (no (S, S) HBM input).
    qi = jax.lax.broadcasted_iota(jnp.int32, (S, S), 0)
    ki = jax.lax.broadcasted_iota(jnp.int32, (S, S), 1)
    mask = jnp.where(qi >= ki, 0.0, -1e30).astype(f32)

    # o_proj accumulator kept in registers; single lane-dense store at the end.
    acc = jnp.zeros((S, HIDDEN), f32)

    # Static unroll over KV groups / heads (nKV=2, n_rep=2 here).
    # TODO(synk): at real head counts use lax.fori_loop (or a grid axis over
    # heads) so vreg live ranges stay bounded.
    for g in range(NUM_KV_HEADS):
        # Per-KV-head projection + RoPE done once per group (repeat_kv shares it).
        kg = rope(jnp.dot(x, wk_ref[g], preferred_element_type=f32)).astype(bf16)
        vg = jnp.dot(x, wv_ref[g], preferred_element_type=f32).astype(bf16)
        for r in range(N_REP):
            h = g * N_REP + r                        # repeat_kv (GQA) mapping
            # 1/sqrt(D) already folded into wq -> no O(S^2) score scaling.
            qh = rope(jnp.dot(x, wq_ref[h], preferred_element_type=f32)).astype(bf16)

            s = jax.lax.dot_general(qh, kg, (((1,), (1,)), ((), ())),
                                    preferred_element_type=f32)      # (S, S)
            s = s + mask
            s = s - jnp.max(s, axis=-1, keepdims=True)
            p = jnp.exp(s)
            p = p * pl.reciprocal(jnp.sum(p, axis=-1, keepdims=True), approx=True)

            o_h = jnp.dot(p.astype(bf16), vg, preferred_element_type=f32)  # (S, D)
            # Per-head partial output projection accumulated in registers
            # (no VMEM scratch, no masked lane-offset stores).
            acc = acc + jnp.dot(o_h.astype(bf16), wo_ref[h],
                                preferred_element_type=f32)

    # NOTE: H=32 < 128 lanes at toy shape -> masked store; lane-dense at real H.
    out_ref[...] = acc


def llama_attention_forward(hidden_states, position_ids,
                            wq, wk, wv, wo, cos_cache, sin_cache):
    """hidden_states: [B,S,H] f32; position_ids: [B,S] int32.
       wq: [H, nH*D], wk/wv: [H, nKV*D], wo: [nH*D, H]  (nn.Linear weight^T)."""
    B, S, H = hidden_states.shape
    scale = 1.0 / math.sqrt(HEAD_DIM)

    x = hidden_states.astype(jnp.bfloat16)

    # RoPE tables gathered at position_ids: one head-width (S, D) table per
    # batch row (NOT tiled across heads). Kept f32 for RoPE accuracy.
    cos_g = cos_cache[position_ids].astype(jnp.float32)      # (B, S, D)
    sin_g = sin_cache[position_ids].astype(jnp.float32)      # (B, S, D)

    # Per-head weight layout (leading head axis -> clean ref[h] indexing, no
    # sub-lane-width lane slices in the kernel); bf16 for the MXU.
    # 1/sqrt(head_dim) folded into wq (RoPE is elementwise, so scaling q before
    # or after RoPE is identical).
    wq_h = (wq * scale).reshape(H, NUM_HEADS, HEAD_DIM) \
                       .transpose(1, 0, 2).astype(jnp.bfloat16)      # (nH, H, D)
    wk_h = wk.reshape(H, NUM_KV_HEADS, HEAD_DIM) \
             .transpose(1, 0, 2).astype(jnp.bfloat16)                # (nKV, H, D)
    wv_h = wv.reshape(H, NUM_KV_HEADS, HEAD_DIM) \
             .transpose(1, 0, 2).astype(jnp.bfloat16)                # (nKV, H, D)
    wo_h = wo.reshape(NUM_HEADS, HEAD_DIM, H).astype(jnp.bfloat16)   # (nH, D, H)

    out = pl.pallas_call(
        _attn_kernel,
        out_shape=jax.ShapeDtypeStruct((B, S, H), jnp.float32),
        grid=(B,),
        in_specs=[
            pl.BlockSpec((None, S, H), lambda b: (b, 0, 0)),          # x
            pl.BlockSpec((None, S, HEAD_DIM), lambda b: (b, 0, 0)),   # cos
            pl.BlockSpec((None, S, HEAD_DIM), lambda b: (b, 0, 0)),   # sin
            pl.BlockSpec((NUM_HEADS, H, HEAD_DIM), lambda b: (0, 0, 0)),     # wq
            pl.BlockSpec((NUM_KV_HEADS, H, HEAD_DIM), lambda b: (0, 0, 0)),  # wk
            pl.BlockSpec((NUM_KV_HEADS, H, HEAD_DIM), lambda b: (0, 0, 0)),  # wv
            pl.BlockSpec((NUM_HEADS, HEAD_DIM, H), lambda b: (0, 0, 0)),     # wo
        ],
        out_specs=pl.BlockSpec((None, S, H), lambda b: (b, 0, 0)),
        compiler_params=pltpu.CompilerParams(
            dimension_semantics=("parallel",)),   # batch axis -> both v7x TCs
    )(x, cos_g, sin_g, wq_h, wk_h, wv_h, wo_h)
    return out


# -------------------------- pure-JAX reference ------------------------------
def _rotate_half(x):
    h = x.shape[-1] // 2
    return jnp.concatenate([-x[..., h:], x[..., :h]], axis=-1)


def reference_forward(hidden_states, position_ids, wq, wk, wv, wo,
                      cos_cache, sin_cache):
    B, S, H = hidden_states.shape
    q = hidden_states @ wq
    k = hidden_states @ wk
    v = hidden_states @ wv
    q = q.reshape(B, S, NUM_HEADS, HEAD_DIM).transpose(0, 2, 1, 3)
    k = k.reshape(B, S, NUM_KV_HEADS, HEAD_DIM).transpose(0, 2, 1, 3)
    v = v.reshape(B, S, NUM_KV_HEADS, HEAD_DIM).transpose(0, 2, 1, 3)
    cos = cos_cache[position_ids][:, None, :, :]
    sin = sin_cache[position_ids][:, None, :, :]
    q = q * cos + _rotate_half(q) * sin
    k = k * cos + _rotate_half(k) * sin
    k = jnp.repeat(k, N_REP, axis=1)
    v = jnp.repeat(v, N_REP, axis=1)
    s = jnp.einsum("bhqd,bhkd->bhqk", q, k) / math.sqrt(HEAD_DIM)
    neg = jnp.finfo(jnp.float32).min
    causal = jnp.where(jnp.tril(jnp.ones((S, S), jnp.bool_)), 0.0, neg)
    s = s + causal[None, None].astype(jnp.float32)
    p = jax.nn.softmax(s.astype(jnp.float32), axis=-1)
    o = jnp.einsum("bhqk,bhkd->bhqd", p, v)
    o = o.transpose(0, 2, 1, 3).reshape(B, S, H)
    return o @ wo


# ----------------------------------- main ------------------------------------
if __name__ == "__main__":
    key = jax.random.PRNGKey(0)
    k_x, k_q, k_k, k_v, k_o = jax.random.split(key, 5)

    hidden_states = jax.random.normal(k_x, (BATCH, SEQ, HIDDEN), jnp.float32)
    # weights stored as [in, out]  (== nn.Linear weight transposed)
    wq = 0.02 * jax.random.normal(k_q, (HIDDEN, NUM_HEADS * HEAD_DIM), jnp.float32)
    wk = 0.02 * jax.random.normal(k_k, (HIDDEN, NUM_KV_HEADS * HEAD_DIM), jnp.float32)
    wv = 0.02 * jax.random.normal(k_v, (HIDDEN, NUM_KV_HEADS * HEAD_DIM), jnp.float32)
    wo = 0.02 * jax.random.normal(k_o, (NUM_HEADS * HEAD_DIM, HIDDEN), jnp.float32)

    # rotary embedding caches (LlamaRotaryEmbedding)
    inv_freq = 1.0 / (ROPE_BASE ** (jnp.arange(0, HEAD_DIM, 2, dtype=jnp.float32)
                                    / HEAD_DIM))
    t = jnp.arange(MAX_POS, dtype=jnp.float32)
    freqs = jnp.einsum("i,j->ij", t, inv_freq)
    emb = jnp.concatenate([freqs, freqs], axis=-1)
    cos_cache = jnp.cos(emb)     # (MAX_POS, HEAD_DIM)
    sin_cache = jnp.sin(emb)

    position_ids = jnp.broadcast_to(jnp.arange(SEQ, dtype=jnp.int32), (BATCH, SEQ))

    out = llama_attention_forward(hidden_states, position_ids,
                                  wq, wk, wv, wo, cos_cache, sin_cache)
    out = jax.block_until_ready(out)

    ref = reference_forward(hidden_states, position_ids,
                            wq, wk, wv, wo, cos_cache, sin_cache)
    assert out.shape == (BATCH, SEQ, HIDDEN)
    # tolerance covers bf16 MXU operands + approx softmax reciprocal
    assert jnp.allclose(out, ref, atol=2e-3, rtol=3e-2), "mismatch vs reference"

    print("KERNEL_OK")
</pallas_src>

<mosaic_0001>
module attributes {stable_mosaic.version = 11 : i64} {
  func.func @_attn_kernel(%arg0: i32, %arg1: memref<1x8x32xbf16, #tpu.memory_space<vmem>>, %arg2: memref<1x8x8xf32, #tpu.memory_space<vmem>>, %arg3: memref<1x8x8xf32, #tpu.memory_space<vmem>>, %arg4: memref<4x32x8xbf16, #tpu.memory_space<vmem>>, %arg5: memref<2x32x8xbf16, #tpu.memory_space<vmem>>, %arg6: memref<2x32x8xbf16, #tpu.memory_space<vmem>>, %arg7: memref<4x8x32xbf16, #tpu.memory_space<vmem>>, %arg8: memref<1x8x32xf32, #tpu.memory_space<vmem>>) attributes {dimension_semantics = [#tpu.dimension_semantics<parallel>], iteration_bounds = array<i64: 2>, scalar_prefetch = 0 : i64, scratch_operands = 0 : i64, tpu.core_type = #tpu.core_type<tc>, window_params = [{transform_indices = @transform_0, window_bounds = array<i64: 1, 8, 32>}, {transform_indices = @transform_1, window_bounds = array<i64: 1, 8, 8>}, {transform_indices = @transform_2, window_bounds = array<i64: 1, 8, 8>}, {pipeline_mode = #tpu.pipeline_mode<synchronous>, transform_indices = @transform_3, window_bounds = array<i64: 4, 32, 8>}, {pipeline_mode = #tpu.pipeline_mode<synchronous>, transform_indices = @transform_4, window_bounds = array<i64: 2, 32, 8>}, {pipeline_mode = #tpu.pipeline_mode<synchronous>, transform_indices = @transform_5, window_bounds = array<i64: 2, 32, 8>}, {pipeline_mode = #tpu.pipeline_mode<synchronous>, transform_indices = @transform_6, window_bounds = array<i64: 4, 8, 32>}, {transform_indices = @transform_7, window_bounds = array<i64: 1, 8, 32>}]} {
    %c0 = arith.constant 0 : index
    %c0_0 = arith.constant 0 : index
    %c0_1 = arith.constant 0 : index
    %0 = vector.load %arg1[%c0, %c0_0, %c0_1] : memref<1x8x32xbf16, #tpu.memory_space<vmem>>, vector<1x8x32xbf16>
    %1 = vector.shape_cast %0 : vector<1x8x32xbf16> to vector<8x32xbf16>
    %c0_2 = arith.constant 0 : index
    %c0_3 = arith.constant 0 : index
    %c0_4 = arith.constant 0 : index
    %2 = vector.load %arg2[%c0_2, %c0_3, %c0_4] : memref<1x8x8xf32, #tpu.memory_space<vmem>>, vector<1x8x8xf32>
    %3 = vector.shape_cast %2 : vector<1x8x8xf32> to vector<8x8xf32>
    %c0_5 = arith.constant 0 : index
    %c0_6 = arith.constant 0 : index
    %c0_7 = arith.constant 0 : index
    %4 = vector.load %arg3[%c0_5, %c0_6, %c0_7] : memref<1x8x8xf32, #tpu.memory_space<vmem>>, vector<1x8x8xf32>
    %5 = vector.shape_cast %4 : vector<1x8x8xf32> to vector<8x8xf32>
    %6 = tpu.iota {dimensions = array<i32: 0>} : vector<8x8xi32>
    %7 = tpu.iota {dimensions = array<i32: 1>} : vector<8x8xi32>
    %c4_i32 = arith.constant 4 : i32
    %8 = vector.broadcast %c4_i32 : i32 to vector<8x8xi32>
    %9 = arith.addi %7, %8 : vector<8x8xi32>
    %10 = arith.cmpi eq, %6, %9 : vector<8x8xi32>
    %cst = arith.constant -1.000000e+00 : f32
    %cst_8 = arith.constant 0.000000e+00 : f32
    %11 = vector.broadcast %cst : f32 to vector<8x8xf32>
    %12 = vector.broadcast %cst_8 : f32 to vector<8x8xf32>
    %13 = arith.select %10, %11, %12 : vector<8x8xi1>, vector<8x8xf32>
    %c4_i32_9 = arith.constant 4 : i32
    %14 = vector.broadcast %c4_i32_9 : i32 to vector<8x8xi32>
    %15 = arith.addi %6, %14 : vector<8x8xi32>
    %16 = arith.cmpi eq, %15, %7 : vector<8x8xi32>
    %cst_10 = arith.constant 1.000000e+00 : f32
    %cst_11 = arith.constant 0.000000e+00 : f32
    %17 = vector.broadcast %cst_10 : f32 to vector<8x8xf32>
    %18 = vector.broadcast %cst_11 : f32 to vector<8x8xf32>
    %19 = arith.select %16, %17, %18 : vector<8x8xi1>, vector<8x8xf32>
    %20 = arith.addf %13, %19 : vector<8x8xf32>
    %21 = tpu.iota {dimensions = array<i32: 0>} : vector<8x8xi32>
    %22 = tpu.iota {dimensions = array<i32: 1>} : vector<8x8xi32>
    %23 = arith.cmpi sge, %21, %22 : vector<8x8xi32>
    %cst_12 = arith.constant 0.000000e+00 : f32
    %cst_13 = arith.constant -1.000000e+30 : f32
    %24 = vector.broadcast %cst_12 : f32 to vector<8x8xf32>
    %25 = vector.broadcast %cst_13 : f32 to vector<8x8xf32>
    %26 = arith.select %23, %24, %25 : vector<8x8xi1>, vector<8x8xf32>
    %cst_14 = arith.constant 0.000000e+00 : f32
    %27 = vector.broadcast %cst_14 : f32 to vector<8x32xf32>
    %c0_15 = arith.constant 0 : index
    %c0_16 = arith.constant 0 : index
    %c0_17 = arith.constant 0 : index
    %28 = vector.load %arg5[%c0_15, %c0_16, %c0_17] : memref<2x32x8xbf16, #tpu.memory_space<vmem>>, vector<1x32x8xbf16>
    %29 = vector.shape_cast %28 : vector<1x32x8xbf16> to vector<32x8xbf16>
    %cst_18 = arith.constant dense<0.000000e+00> : vector<8x8xf32>
    %30 = tpu.matmul %1, %29, %cst_18 {dimension_numbers = #tpu.dot_dimension_numbers<[1], [0], [0], [1], [0, 0, 1, 1], [], []>} : vector<8x32xbf16>, vector<32x8xbf16>, vector<8x8xf32> -> vector<8x8xf32>
    %31 = arith.mulf %30, %3 : vector<8x8xf32>
    %cst_19 = arith.constant dense<0.000000e+00> : vector<8x8xf32>
    %32 = tpu.matmul %30, %20, %cst_19 {dimension_numbers = #tpu.dot_dimension_numbers<[1], [0], [0], [1], [0, 0, 1, 1], [], []>} : vector<8x8xf32>, vector<8x8xf32>, vector<8x8xf32> -> vector<8x8xf32>
    %33 = arith.mulf %32, %5 : vector<8x8xf32>
    %34 = arith.addf %31, %33 : vector<8x8xf32>
    %35 = arith.truncf %34 : vector<8x8xf32> to vector<8x8xbf16>
    %c0_20 = arith.constant 0 : index
    %c0_21 = arith.constant 0 : index
    %c0_22 = arith.constant 0 : index
    %36 = vector.load %arg6[%c0_20, %c0_21, %c0_22] : memref<2x32x8xbf16, #tpu.memory_space<vmem>>, vector<1x32x8xbf16>
    %37 = vector.shape_cast %36 : vector<1x32x8xbf16> to vector<32x8xbf16>
    %cst_23 = arith.constant dense<0.000000e+00> : vector<8x8xf32>
    %38 = tpu.matmul %1, %37, %cst_23 {dimension_numbers = #tpu.dot_dimension_numbers<[1], [0], [0], [1], [0, 0, 1, 1], [], []>} : vector<8x32xbf16>, vector<32x8xbf16>, vector<8x8xf32> -> vector<8x8xf32>
    %39 = arith.truncf %38 : vector<8x8xf32> to vector<8x8xbf16>
    %c0_24 = arith.constant 0 : index
    %c0_25 = arith.constant 0 : index
    %c0_26 = arith.constant 0 : index
    %40 = vector.load %arg4[%c0_24, %c0_25, %c0_26] : memref<4x32x8xbf16, #tpu.memory_space<vmem>>, vector<1x32x8xbf16>
    %41 = vector.shape_cast %40 : vector<1x32x8xbf16> to vector<32x8xbf16>
    %cst_27 = arith.constant dense<0.000000e+00> : vector<8x8xf32>
    %42 = tpu.matmul %1, %41, %cst_27 {dimension_numbers = #tpu.dot_dimension_numbers<[1], [0], [0], [1], [0, 0, 1, 1], [], []>} : vector<8x32xbf16>, vector<32x8xbf16>, vector<8x8xf32> -> vector<8x8xf32>
    %43 = arith.mulf %42, %3 : vector<8x8xf32>
    %cst_28 = arith.constant dense<0.000000e+00> : vector<8x8xf32>
    %44 = tpu.matmul %42, %20, %cst_28 {dimension_numbers = #tpu.dot_dimension_numbers<[1], [0], [0], [1], [0, 0, 1, 1], [], []>} : vector<8x8xf32>, vector<8x8xf32>, vector<8x8xf32> -> vector<8x8xf32>
    %45 = arith.mulf %44, %5 : vector<8x8xf32>
    %46 = arith.addf %43, %45 : vector<8x8xf32>
    %47 = arith.truncf %46 : vector<8x8xf32> to vector<8x8xbf16>
    %cst_29 = arith.constant dense<0.000000e+00> : vector<8x8xf32>
    %48 = tpu.matmul %47, %35, %cst_29 {dimension_numbers = #tpu.dot_dimension_numbers<[1], [1], [0], [0], [0, 0, 1, 0], [], []>} : vector<8x8xbf16>, vector<8x8xbf16>, vector<8x8xf32> -> vector<8x8xf32>
    %49 = arith.addf %48, %26 : vector<8x8xf32>
    %cst_30 = arith.constant dense<0xFF800000> : vector<8xf32>
    %50 = vector.multi_reduction <maximumf>, %49, %cst_30 [1] : vector<8x8xf32> to vector<8xf32>
    %51 = vector.shape_cast %50 : vector<8xf32> to vector<8x1xf32>
    %52 = vector.broadcast %51 : vector<8x1xf32> to vector<8x8xf32>
    %53 = arith.subf %49, %52 : vector<8x8xf32>
    %54 = math.exp %53 : vector<8x8xf32>
    %cst_31 = arith.constant dense<0.000000e+00> : vector<8xf32>
    %55 = vector.multi_reduction <add>, %54, %cst_31 [1] : vector<8x8xf32> to vector<8xf32>
    %56 = vector.shape_cast %55 : vector<8xf32> to vector<8x1xf32>
    %57 = tpu.reciprocal %56 {approx = true} : vector<8x1xf32> -> vector<8x1xf32>
    %58 = vector.broadcast %57 : vector<8x1xf32> to vector<8x8xf32>
    %59 = arith.mulf %54, %58 : vector<8x8xf32>
    %60 = arith.truncf %59 : vector<8x8xf32> to vector<8x8xbf16>
    %cst_32 = arith.constant dense<0.000000e+00> : vector<8x8xf32>
    %61 = tpu.matmul %60, %39, %cst_32 {dimension_numbers = #tpu.dot_dimension_numbers<[1], [0], [0], [1], [0, 0, 1, 1], [], []>} : vector<8x8xbf16>, vector<8x8xbf16>, vector<8x8xf32> -> vector<8x8xf32>
    %62 = arith.truncf %61 : vector<8x8xf32> to vector<8x8xbf16>
    %c0_33 = arith.constant 0 : index
    %c0_34 = arith.constant 0 : index
    %c0_35 = arith.constant 0 : index
    %63 = vector.load %arg7[%c0_33, %c0_34, %c0_35] : memref<4x8x32xbf16, #tpu.memory_space<vmem>>, vector<1x8x32xbf16>
    %64 = vector.shape_cast %63 : vector<1x8x32xbf16> to vector<8x32xbf16>
    %cst_36 = arith.constant dense<0.000000e+00> : vector<8x32xf32>
    %65 = tpu.matmul %62, %64, %cst_36 {dimension_numbers = #tpu.dot_dimension_numbers<[1], [0], [0], [1], [0, 0, 1, 1], [], []>} : vector<8x8xbf16>, vector<8x32xbf16>, vector<8x32xf32> -> vector<8x32xf32>
    %66 = arith.addf %27, %65 : vector<8x32xf32>
    %c1 = arith.constant 1 : index
    %c0_37 = arith.constant 0 : index
    %c0_38 = arith.constant 0 : index
    %67 = vector.load %arg4[%c1, %c0_37, %c0_38] : memref<4x32x8xbf16, #tpu.memory_space<vmem>>, vector<1x32x8xbf16>
    %68 = vector.shape_cast %67 : vector<1x32x8xbf16> to vector<32x8xbf16>
    %cst_39 = arith.constant dense<0.000000e+00> : vector<8x8xf32>
    %69 = tpu.matmul %1, %68, %cst_39 {dimension_numbers = #tpu.dot_dimension_numbers<[1], [0], [0], [1], [0, 0, 1, 1], [], []>} : vector<8x32xbf16>, vector<32x8xbf16>, vector<8x8xf32> -> vector<8x8xf32>
    %70 = arith.mulf %69, %3 : vector<8x8xf32>
    %cst_40 = arith.constant dense<0.000000e+00> : vector<8x8xf32>
    %71 = tpu.matmul %69, %20, %cst_40 {dimension_numbers = #tpu.dot_dimension_numbers<[1], [0], [0], [1], [0, 0, 1, 1], [], []>} : vector<8x8xf32>, vector<8x8xf32>, vector<8x8xf32> -> vector<8x8xf32>
    %72 = arith.mulf %71, %5 : vector<8x8xf32>
    %73 = arith.addf %70, %72 : vector<8x8xf32>
    %74 = arith.truncf %73 : vector<8x8xf32> to vector<8x8xbf16>
    %cst_41 = arith.constant dense<0.000000e+00> : vector<8x8xf32>
    %75 = tpu.matmul %74, %35, %cst_41 {dimension_numbers = #tpu.dot_dimension_numbers<[1], [1], [0], [0], [0, 0, 1, 0], [], []>} : vector<8x8xbf16>, vector<8x8xbf16>, vector<8x8xf32> -> vector<8x8xf32>
    %76 = arith.addf %75, %26 : vector<8x8xf32>
    %cst_42 = arith.constant dense<0xFF800000> : vector<8xf32>
    %77 = vector.multi_reduction <maximumf>, %76, %cst_42 [1] : vector<8x8xf32> to vector<8xf32>
    %78 = vector.shape_cast %77 : vector<8xf32> to vector<8x1xf32>
    %79 = vector.broadcast %78 : vector<8x1xf32> to vector<8x8xf32>
    %80 = arith.subf %76, %79 : vector<8x8xf32>
    %81 = math.exp %80 : vector<8x8xf32>
    %cst_43 = arith.constant dense<0.000000e+00> : vector<8xf32>
    %82 = vector.multi_reduction <add>, %81, %cst_43 [1] : vector<8x8xf32> to vector<8xf32>
    %83 = vector.shape_cast %82 : vector<8xf32> to vector<8x1xf32>
    %84 = tpu.reciprocal %83 {approx = true} : vector<8x1xf32> -> vector<8x1xf32>
    %85 = vector.broadcast %84 : vector<8x1xf32> to vector<8x8xf32>
    %86 = arith.mulf %81, %85 : vector<8x8xf32>
    %87 = arith.truncf %86 : vector<8x8xf32> to vector<8x8xbf16>
    %cst_44 = arith.constant dense<0.000000e+00> : vector<8x8xf32>
    %88 = tpu.matmul %87, %39, %cst_44 {dimension_numbers = #tpu.dot_dimension_numbers<[1], [0], [0], [1], [0, 0, 1, 1], [], []>} : vector<8x8xbf16>, vector<8x8xbf16>, vector<8x8xf32> -> vector<8x8xf32>
    %89 = arith.truncf %88 : vector<8x8xf32> to vector<8x8xbf16>
    %c1_45 = arith.constant 1 : index
    %c0_46 = arith.constant 0 : index
    %c0_47 = arith.constant 0 : index
    %90 = vector.load %arg7[%c1_45, %c0_46, %c0_47] : memref<4x8x32xbf16, #tpu.memory_space<vmem>>, vector<1x8x32xbf16>
    %91 = vector.shape_cast %90 : vector<1x8x32xbf16> to vector<8x32xbf16>
    %cst_48 = arith.constant dense<0.000000e+00> : vector<8x32xf32>
    %92 = tpu.matmul %89, %91, %cst_48 {dimension_numbers = #tpu.dot_dimension_numbers<[1], [0], [0], [1], [0, 0, 1, 1], [], []>} : vector<8x8xbf16>, vector<8x32xbf16>, vector<8x32xf32> -> vector<8x32xf32>
    %93 = arith.addf %66, %92 : vector<8x32xf32>
    %c1_49 = arith.constant 1 : index
    %c0_50 = arith.constant 0 : index
    %c0_51 = arith.constant 0 : index
    %94 = vector.load %arg5[%c1_49, %c0_50, %c0_51] : memref<2x32x8xbf16, #tpu.memory_space<vmem>>, vector<1x32x8xbf16>
    %95 = vector.shape_cast %94 : vector<1x32x8xbf16> to vector<32x8xbf16>
    %cst_52 = arith.constant dense<0.000000e+00> : vector<8x8xf32>
    %96 = tpu.matmul %1, %95, %cst_52 {dimension_numbers = #tpu.dot_dimension_numbers<[1], [0], [0], [1], [0, 0, 1, 1], [], []>} : vector<8x32xbf16>, vector<32x8xbf16>, vector<8x8xf32> -> vector<8x8xf32>
    %97 = arith.mulf %96, %3 : vector<8x8xf32>
    %cst_53 = arith.constant dense<0.000000e+00> : vector<8x8xf32>
    %98 = tpu.matmul %96, %20, %cst_53 {dimension_numbers = #tpu.dot_dimension_numbers<[1], [0], [0], [1], [0, 0, 1, 1], [], []>} : vector<8x8xf32>, vector<8x8xf32>, vector<8x8xf32> -> vector<8x8xf32>
    %99 = arith.mulf %98, %5 : vector<8x8xf32>
    %100 = arith.addf %97, %99 : vector<8x8xf32>
    %101 = arith.truncf %100 : vector<8x8xf32> to vector<8x8xbf16>
    %c1_54 = arith.constant 1 : index
    %c0_55 = arith.constant 0 : index
    %c0_56 = arith.constant 0 : index
    %102 = vector.load %arg6[%c1_54, %c0_55, %c0_56] : memref<2x32x8xbf16, #tpu.memory_space<vmem>>, vector<1x32x8xbf16>
    %103 = vector.shape_cast %102 : vector<1x32x8xbf16> to vector<32x8xbf16>
    %cst_57 = arith.constant dense<0.000000e+00> : vector<8x8xf32>
    %104 = tpu.matmul %1, %103, %cst_57 {dimension_numbers = #tpu.dot_dimension_numbers<[1], [0], [0], [1], [0, 0, 1, 1], [], []>} : vector<8x32xbf16>, vector<32x8xbf16>, vector<8x8xf32> -> vector<8x8xf32>
    %105 = arith.truncf %104 : vector<8x8xf32> to vector<8x8xbf16>
    %c2 = arith.constant 2 : index
    %c0_58 = arith.constant 0 : index
    %c0_59 = arith.constant 0 : index
    %106 = vector.load %arg4[%c2, %c0_58, %c0_59] : memref<4x32x8xbf16, #tpu.memory_space<vmem>>, vector<1x32x8xbf16>
    %107 = vector.shape_cast %106 : vector<1x32x8xbf16> to vector<32x8xbf16>
    %cst_60 = arith.constant dense<0.000000e+00> : vector<8x8xf32>
    %108 = tpu.matmul %1, %107, %cst_60 {dimension_numbers = #tpu.dot_dimension_numbers<[1], [0], [0], [1], [0, 0, 1, 1], [], []>} : vector<8x32xbf16>, vector<32x8xbf16>, vector<8x8xf32> -> vector<8x8xf32>
    %109 = arith.mulf %108, %3 : vector<8x8xf32>
    %cst_61 = arith.constant dense<0.000000e+00> : vector<8x8xf32>
    %110 = tpu.matmul %108, %20, %cst_61 {dimension_numbers = #tpu.dot_dimension_numbers<[1], [0], [0], [1], [0, 0, 1, 1], [], []>} : vector<8x8xf32>, vector<8x8xf32>, vector<8x8xf32> -> vector<8x8xf32>
    %111 = arith.mulf %110, %5 : vector<8x8xf32>
    %112 = arith.addf %109, %111 : vector<8x8xf32>
    %113 = arith.truncf %112 : vector<8x8xf32> to vector<8x8xbf16>
    %cst_62 = arith.constant dense<0.000000e+00> : vector<8x8xf32>
    %114 = tpu.matmul %113, %101, %cst_62 {dimension_numbers = #tpu.dot_dimension_numbers<[1], [1], [0], [0], [0, 0, 1, 0], [], []>} : vector<8x8xbf16>, vector<8x8xbf16>, vector<8x8xf32> -> vector<8x8xf32>
    %115 = arith.addf %114, %26 : vector<8x8xf32>
    %cst_63 = arith.constant dense<0xFF800000> : vector<8xf32>
    %116 = vector.multi_reduction <maximumf>, %115, %cst_63 [1] : vector<8x8xf32> to vector<8xf32>
    %117 = vector.shape_cast %116 : vector<8xf32> to vector<8x1xf32>
    %118 = vector.broadcast %117 : vector<8x1xf32> to vector<8x8xf32>
    %119 = arith.subf %115, %118 : vector<8x8xf32>
    %120 = math.exp %119 : vector<8x8xf32>
    %cst_64 = arith.constant dense<0.000000e+00> : vector<8xf32>
    %121 = vector.multi_reduction <add>, %120, %cst_64 [1] : vector<8x8xf32> to vector<8xf32>
    %122 = vector.shape_cast %121 : vector<8xf32> to vector<8x1xf32>
    %123 = tpu.reciprocal %122 {approx = true} : vector<8x1xf32> -> vector<8x1xf32>
    %124 = vector.broadcast %123 : vector<8x1xf32> to vector<8x8xf32>
    %125 = arith.mulf %120, %124 : vector<8x8xf32>
    %126 = arith.truncf %125 : vector<8x8xf32> to vector<8x8xbf16>
    %cst_65 = arith.constant dense<0.000000e+00> : vector<8x8xf32>
    %127 = tpu.matmul %126, %105, %cst_65 {dimension_numbers = #tpu.dot_dimension_numbers<[1], [0], [0], [1], [0, 0, 1, 1], [], []>} : vector<8x8xbf16>, vector<8x8xbf16>, vector<8x8xf32> -> vector<8x8xf32>
    %128 = arith.truncf %127 : vector<8x8xf32> to vector<8x8xbf16>
    %c2_66 = arith.constant 2 : index
    %c0_67 = arith.constant 0 : index
    %c0_68 = arith.constant 0 : index
    %129 = vector.load %arg7[%c2_66, %c0_67, %c0_68] : memref<4x8x32xbf16, #tpu.memory_space<vmem>>, vector<1x8x32xbf16>
    %130 = vector.shape_cast %129 : vector<1x8x32xbf16> to vector<8x32xbf16>
    %cst_69 = arith.constant dense<0.000000e+00> : vector<8x32xf32>
    %131 = tpu.matmul %128, %130, %cst_69 {dimension_numbers = #tpu.dot_dimension_numbers<[1], [0], [0], [1], [0, 0, 1, 1], [], []>} : vector<8x8xbf16>, vector<8x32xbf16>, vector<8x32xf32> -> vector<8x32xf32>
    %132 = arith.addf %93, %131 : vector<8x32xf32>
    %c3 = arith.constant 3 : index
    %c0_70 = arith.constant 0 : index
    %c0_71 = arith.constant 0 : index
    %133 = vector.load %arg4[%c3, %c0_70, %c0_71] : memref<4x32x8xbf16, #tpu.memory_space<vmem>>, vector<1x32x8xbf16>
    %134 = vector.shape_cast %133 : vector<1x32x8xbf16> to vector<32x8xbf16>
    %cst_72 = arith.constant dense<0.000000e+00> : vector<8x8xf32>
    %135 = tpu.matmul %1, %134, %cst_72 {dimension_numbers = #tpu.dot_dimension_numbers<[1], [0], [0], [1], [0, 0, 1, 1], [], []>} : vector<8x32xbf16>, vector<32x8xbf16>, vector<8x8xf32> -> vector<8x8xf32>
    %136 = arith.mulf %135, %3 : vector<8x8xf32>
    %cst_73 = arith.constant dense<0.000000e+00> : vector<8x8xf32>
    %137 = tpu.matmul %135, %20, %cst_73 {dimension_numbers = #tpu.dot_dimension_numbers<[1], [0], [0], [1], [0, 0, 1, 1], [], []>} : vector<8x8xf32>, vector<8x8xf32>, vector<8x8xf32> -> vector<8x8xf32>
    %138 = arith.mulf %137, %5 : vector<8x8xf32>
    %139 = arith.addf %136, %138 : vector<8x8xf32>
    %140 = arith.truncf %139 : vector<8x8xf32> to vector<8x8xbf16>
    %cst_74 = arith.constant dense<0.000000e+00> : vector<8x8xf32>
    %141 = tpu.matmul %140, %101, %cst_74 {dimension_numbers = #tpu.dot_dimension_numbers<[1], [1], [0], [0], [0, 0, 1, 0], [], []>} : vector<8x8xbf16>, vector<8x8xbf16>, vector<8x8xf32> -> vector<8x8xf32>
    %142 = arith.addf %141, %26 : vector<8x8xf32>
    %cst_75 = arith.constant dense<0xFF800000> : vector<8xf32>
    %143 = vector.multi_reduction <maximumf>, %142, %cst_75 [1] : vector<8x8xf32> to vector<8xf32>
    %144 = vector.shape_cast %143 : vector<8xf32> to vector<8x1xf32>
    %145 = vector.broadcast %144 : vector<8x1xf32> to vector<8x8xf32>
    %146 = arith.subf %142, %145 : vector<8x8xf32>
    %147 = math.exp %146 : vector<8x8xf32>
    %cst_76 = arith.constant dense<0.000000e+00> : vector<8xf32>
    %148 = vector.multi_reduction <add>, %147, %cst_76 [1] : vector<8x8xf32> to vector<8xf32>
    %149 = vector.shape_cast %148 : vector<8xf32> to vector<8x1xf32>
    %150 = tpu.reciprocal %149 {approx = true} : vector<8x1xf32> -> vector<8x1xf32>
    %151 = vector.broadcast %150 : vector<8x1xf32> to vector<8x8xf32>
    %152 = arith.mulf %147, %151 : vector<8x8xf32>
    %153 = arith.truncf %152 : vector<8x8xf32> to vector<8x8xbf16>
    %cst_77 = arith.constant dense<0.000000e+00> : vector<8x8xf32>
    %154 = tpu.matmul %153, %105, %cst_77 {dimension_numbers = #tpu.dot_dimension_numbers<[1], [0], [0], [1], [0, 0, 1, 1], [], []>} : vector<8x8xbf16>, vector<8x8xbf16>, vector<8x8xf32> -> vector<8x8xf32>
    %155 = arith.truncf %154 : vector<8x8xf32> to vector<8x8xbf16>
    %c3_78 = arith.constant 3 : index
    %c0_79 = arith.constant 0 : index
    %c0_80 = arith.constant 0 : index
    %156 = vector.load %arg7[%c3_78, %c0_79, %c0_80] : memref<4x8x32xbf16, #tpu.memory_space<vmem>>, vector<1x8x32xbf16>
    %157 = vector.shape_cast %156 : vector<1x8x32xbf16> to vector<8x32xbf16>
    %cst_81 = arith.constant dense<0.000000e+00> : vector<8x32xf32>
    %158 = tpu.matmul %155, %157, %cst_81 {dimension_numbers = #tpu.dot_dimension_numbers<[1], [0], [0], [1], [0, 0, 1, 1], [], []>} : vector<8x8xbf16>, vector<8x32xbf16>, vector<8x32xf32> -> vector<8x32xf32>
    %159 = arith.addf %132, %158 : vector<8x32xf32>
    %c0_82 = arith.constant 0 : index
    %c0_83 = arith.constant 0 : index
    %c0_84 = arith.constant 0 : index
    %160 = vector.load %arg8[%c0_82, %c0_83, %c0_84] : memref<1x8x32xf32, #tpu.memory_space<vmem>>, vector<1x8x32xf32>
    %161 = vector.shape_cast %160 : vector<1x8x32xf32> to vector<8x32xf32>
    %162 = vector.shape_cast %159 : vector<8x32xf32> to vector<1x8x32xf32>
    tpu.vector_store %arg8[%c0_82, %c0_83, %c0_84], %162 {strides = array<i32>} : memref<1x8x32xf32, #tpu.memory_space<vmem>>, vector<1x8x32xf32>,
    return
  }
  func.func @transform_0(%arg0: i32) -> (i32, i32, i32) {
    %c0_i32 = arith.constant 0 : i32
    %c0_i32_0 = arith.constant 0 : i32
    %c0_i32_1 = arith.constant 0 : i32
    return %arg0, %c0_i32, %c0_i32_0 : i32, i32, i32
  }
  func.func @transform_1(%arg0: i32) -> (i32, i32, i32) {
    %c0_i32 = arith.constant 0 : i32
    %c0_i32_0 = arith.constant 0 : i32
    %c0_i32_1 = arith.constant 0 : i32
    return %arg0, %c0_i32, %c0_i32_0 : i32, i32, i32
  }
  func.func @transform_2(%arg0: i32) -> (i32, i32, i32) {
    %c0_i32 = arith.constant 0 : i32
    %c0_i32_0 = arith.constant 0 : i32
    %c0_i32_1 = arith.constant 0 : i32
    return %arg0, %c0_i32, %c0_i32_0 : i32, i32, i32
  }
  func.func @transform_3(%arg0: i32) -> (i32, i32, i32) {
    %c0_i32 = arith.constant 0 : i32
    %c0_i32_0 = arith.constant 0 : i32
    %c0_i32_1 = arith.constant 0 : i32
    %c0_i32_2 = arith.constant 0 : i32
    return %c0_i32, %c0_i32_0, %c0_i32_1 : i32, i32, i32
  }
  func.func @transform_4(%arg0: i32) -> (i32, i32, i32) {
    %c0_i32 = arith.constant 0 : i32
    %c0_i32_0 = arith.constant 0 : i32
    %c0_i32_1 = arith.constant 0 : i32
    %c0_i32_2 = arith.constant 0 : i32
    return %c0_i32, %c0_i32_0, %c0_i32_1 : i32, i32, i32
  }
  func.func @transform_5(%arg0: i32) -> (i32, i32, i32) {
    %c0_i32 = arith.constant 0 : i32
    %c0_i32_0 = arith.constant 0 : i32
    %c0_i32_1 = arith.constant 0 : i32
    %c0_i32_2 = arith.constant 0 : i32
    return %c0_i32, %c0_i32_0, %c0_i32_1 : i32, i32, i32
  }
  func.func @transform_6(%arg0: i32) -> (i32, i32, i32) {
    %c0_i32 = arith.constant 0 : i32
    %c0_i32_0 = arith.constant 0 : i32
    %c0_i32_1 = arith.constant 0 : i32
    %c0_i32_2 = arith.constant 0 : i32
    return %c0_i32, %c0_i32_0, %c0_i32_1 : i32, i32, i32
  }
  func.func @transform_7(%arg0: i32) -> (i32, i32, i32) {
    %c0_i32 = arith.constant 0 : i32
    %c0_i32_0 = arith.constant 0 : i32
    %c0_i32_1 = arith.constant 0 : i32
    return %arg0, %c0_i32, %c0_i32_0 : i32, i32, i32
  }
}

</mosaic_0001>

<llo_original>
// kernel: tpu_custom_call.1
$region0: #{tpu_custom_call.1}
  #allocation0 [shape = 'u32[]', space=smem, size = 0x4, offset = 0x4, fixed_abs, tag = 'smem constant byte address 0x4 - core index']
  #allocation1 [shape = 'u32[72,128]{1,0:T(1,128)}', space=vmem, size = 0x9000, scoped, tag = 'internal scratch']
  %s0 = inlined_call_operand.vmem [shape: bf16[2,8,32], index: 0, kind: input, shape index: {}]
  %s1 = inlined_call_operand.vmem [shape: f32[2,8,8], index: 1, kind: input, shape index: {}]
  %s2 = inlined_call_operand.vmem [shape: f32[2,8,8], index: 2, kind: input, shape index: {}]
  %s3 = inlined_call_operand.vmem [shape: bf16[4,32,8], index: 3, kind: input, shape index: {}]
  %s4 = inlined_call_operand.vmem [shape: bf16[2,32,8], index: 4, kind: input, shape index: {}]
  %s5 = inlined_call_operand.vmem [shape: bf16[2,32,8], index: 5, kind: input, shape index: {}]
  %s6 = inlined_call_operand.vmem [shape: bf16[4,8,32], index: 6, kind: input, shape index: {}]
  %s7 = inlined_call_operand.hbm [shape: f32[2,8,32], index: 7, kind: output, shape index: {}]
  %s8 = sld [smem:[#allocation0]]
  $region61: #{tpu_custom_call.1} parent=0
    _
  %s10 = ssub.s32 1, %s8
  %s11 = scalar_select 0, %s10, %s8
  $region1: #{tpu_custom_call.1} parent=0
    #allocation2 [shape = 'u8[8192]{0}', space=vmem, size = 0x2000, scoped, tag = 'output window, operand 0']
    #allocation3 [shape = 's32[2]{0}', space=sflag, size = 0x8, scoped, tag = 'scoped memory for tpu_custom_call.1']
    %12 = vsyncpa [#allocation3], 0
    %s13 = scalar_lea.sflag [#allocation3], 1
    %14 = vsyncpa %s13, 0
    loop: start=0, step=1, limit=4
    $region2: #{tpu_custom_call.1} parent=1 // loop_pre_header
      _
    $region3: #{tpu_custom_call.1} parent=1 // loop_header
      %s16 = sphi 0, %s20
      %p17 = scmp.ge.s32.totalorder %s16, 4
      %s26 = sphi 0, %s28
      %s29 = sphi 0, %s26
      %s30 = sphi 0, %s29
      %s46 = sphi 0, %s30
      %s52 = sphi 0, %s54
      %s55 = sphi 0, %s52
      %s56 = sphi 0, %s55
      %s72 = sphi 0, %s56
      %s78 = sphi 0, %s80
      %s81 = sphi 0, %s78
      %s82 = sphi 0, %s81
      %s98 = sphi 0, %s82
      %s102 = sphi 0, %s102
      %s104 = sphi 0, %s102
      %s105 = sphi 0, %s104
      %s119 = sphi 0, %s105
      %s123 = sphi 0, %s123
      %s125 = sphi 0, %s123
      %s126 = sphi 0, %s125
      %s140 = sphi 0, %s126
      %s144 = sphi 0, %s144
      %s146 = sphi 0, %s144
      %s147 = sphi 0, %s146
      %s161 = sphi 0, %s147
      %s165 = sphi 0, %s165
      %s167 = sphi 0, %s165
      %s168 = sphi 0, %s167
      %s182 = sphi 0, %s168
      %s188 = sphi 0, %s190
      %s191 = sphi 0, %s188
      %s192 = sphi 0, %s191
      %s208 = sphi 0, %s192
    $region4: #{tpu_custom_call.1} parent=1 // loop_header_branch
      %19 = sbr.rel (%p17) target = $region8
    $region5: #{tpu_custom_call.1} parent=1 // loop_body
      %s21 = ssub.s32 %s16, 1
      %s22 = ssub.s32 %s16, 2
      %s23 = sadd.s32 %s16, 1
      %s24 = ssub.s32 %s16, %s23
      %p25 = scmp.eq.s32.totalorder %s24, 0
      %s27 = sadd.s32 %s26, 1
      %s28 = scalar_select %p25, %s26, %s27
      %p31 = pneg %p25
      %p32 = scmp.eq.s32.totalorder %s16, 1
      %p33 = por %p31, %p32
      %p34 = scmp.ne.s32.totalorder %s26, %s29
      %p35 = scmp.eq.s32.totalorder %s16, 0
      %p36 = por %p34, %p35
      %p37 = scmp.ne.s32.totalorder %s26, %s29
      %p38 = scmp.eq.s32.totalorder %s21, 1
      %p39 = por %p37, %p38
      %p40 = scmp.ne.s32.totalorder %s29, %s30
      %p41 = scmp.eq.s32.totalorder %s21, 0
      %p42 = por %p40, %p41
      %p43 = scmp.ne.s32.totalorder %s29, %s30
      %p44 = scmp.eq.s32.totalorder %s22, 1
      %p45 = por %p43, %p44
      %p47 = scmp.ne.s32.totalorder %s30, %s46
      %p48 = scmp.eq.s32.totalorder %s22, 0
      %p49 = por %p47, %p48
      %s50 = ssub.s32 %s16, %s23
      %p51 = scmp.eq.s32.totalorder %s50, 0
      %s53 = sadd.s32 %s52, 1
      %s54 = scalar_select %p51, %s52, %s53
      %p57 = pneg %p51
      %p58 = scmp.eq.s32.totalorder %s16, 1
      %p59 = por %p57, %p58
      %p60 = scmp.ne.s32.totalorder %s52, %s55
      %p61 = scmp.eq.s32.totalorder %s16, 0
      %p62 = por %p60, %p61
      %p63 = scmp.ne.s32.totalorder %s52, %s55
      %p64 = scmp.eq.s32.totalorder %s21, 1
      %p65 = por %p63, %p64
      %p66 = scmp.ne.s32.totalorder %s55, %s56
      %p67 = scmp.eq.s32.totalorder %s21, 0
      %p68 = por %p66, %p67
      %p69 = scmp.ne.s32.totalorder %s55, %s56
      %p70 = scmp.eq.s32.totalorder %s22, 1
      %p71 = por %p69, %p70
      %p73 = scmp.ne.s32.totalorder %s56, %s72
      %p74 = scmp.eq.s32.totalorder %s22, 0
      %p75 = por %p73, %p74
      %s76 = ssub.s32 %s16, %s23
      %p77 = scmp.eq.s32.totalorder %s76, 0
      %s79 = sadd.s32 %s78, 1
      %s80 = scalar_select %p77, %s78, %s79
      %p83 = pneg %p77
      %p84 = scmp.eq.s32.totalorder %s16, 1
      %p85 = por %p83, %p84
      %p86 = scmp.ne.s32.totalorder %s78, %s81
      %p87 = scmp.eq.s32.totalorder %s16, 0
      %p88 = por %p86, %p87
      %p89 = scmp.ne.s32.totalorder %s78, %s81
      %p90 = scmp.eq.s32.totalorder %s21, 1
      %p91 = por %p89, %p90
      %p92 = scmp.ne.s32.totalorder %s81, %s82
      %p93 = scmp.eq.s32.totalorder %s21, 0
      %p94 = por %p92, %p93
      %p95 = scmp.ne.s32.totalorder %s81, %s82
      %p96 = scmp.eq.s32.totalorder %s22, 1
      %p97 = por %p95, %p96
      %p99 = scmp.ne.s32.totalorder %s82, %s98
      %p100 = scmp.eq.s32.totalorder %s22, 0
      %p101 = por %p99, %p100
      %s103 = sadd.s32 %s102, 1
      %p106 = scmp.eq.s32.totalorder %s16, 1
      %p107 = scmp.ne.s32.totalorder %s102, %s104
      %p108 = scmp.eq.s32.totalorder %s16, 0
      %p109 = por %p107, %p108
      %p110 = scmp.ne.s32.totalorder %s102, %s104
      %p111 = scmp.eq.s32.totalorder %s21, 1
      %p112 = por %p110, %p111
      %p113 = scmp.ne.s32.totalorder %s104, %s105
      %p114 = scmp.eq.s32.totalorder %s21, 0
      %p115 = por %p113, %p114
      %p116 = scmp.ne.s32.totalorder %s104, %s105
      %p117 = scmp.eq.s32.totalorder %s22, 1
      %p118 = por %p116, %p117
      %p120 = scmp.ne.s32.totalorder %s105, %s119
      %p121 = scmp.eq.s32.totalorder %s22, 0
      %p122 = por %p120, %p121
      %s124 = sadd.s32 %s123, 1
      %p127 = scmp.eq.s32.totalorder %s16, 1
      %p128 = scmp.ne.s32.totalorder %s123, %s125
      %p129 = scmp.eq.s32.totalorder %s16, 0
      %p130 = por %p128, %p129
      %p131 = scmp.ne.s32.totalorder %s123, %s125
      %p132 = scmp.eq.s32.totalorder %s21, 1
      %p133 = por %p131, %p132
      %p134 = scmp.ne.s32.totalorder %s125, %s126
      %p135 = scmp.eq.s32.totalorder %s21, 0
      %p136 = por %p134, %p135
      %p137 = scmp.ne.s32.totalorder %s125, %s126
      %p138 = scmp.eq.s32.totalorder %s22, 1
      %p139 = por %p137, %p138
      %p141 = scmp.ne.s32.totalorder %s126, %s140
      %p142 = scmp.eq.s32.totalorder %s22, 0
      %p143 = por %p141, %p142
      %s145 = sadd.s32 %s144, 1
      %p148 = scmp.eq.s32.totalorder %s16, 1
      %p149 = scmp.ne.s32.totalorder %s144, %s146
      %p150 = scmp.eq.s32.totalorder %s16, 0
      %p151 = por %p149, %p150
      %p152 = scmp.ne.s32.totalorder %s144, %s146
      %p153 = scmp.eq.s32.totalorder %s21, 1
      %p154 = por %p152, %p153
      %p155 = scmp.ne.s32.totalorder %s146, %s147
      %p156 = scmp.eq.s32.totalorder %s21, 0
      %p157 = por %p155, %p156
      %p158 = scmp.ne.s32.totalorder %s146, %s147
      %p159 = scmp.eq.s32.totalorder %s22, 1
      %p160 = por %p158, %p159
      %p162 = scmp.ne.s32.totalorder %s147, %s161
      %p163 = scmp.eq.s32.totalorder %s22, 0
      %p164 = por %p162, %p163
      %s166 = sadd.s32 %s165, 1
      %p169 = scmp.eq.s32.totalorder %s16, 1
      %p170 = scmp.ne.s32.totalorder %s165, %s167
      %p171 = scmp.eq.s32.totalorder %s16, 0
      %p172 = por %p170, %p171
      %p173 = scmp.ne.s32.totalorder %s165, %s167
      %p174 = scmp.eq.s32.totalorder %s21, 1
      %p175 = por %p173, %p174
      %p176 = scmp.ne.s32.totalorder %s167, %s168
      %p177 = scmp.eq.s32.totalorder %s21, 0
      %p178 = por %p176, %p177
      %p179 = scmp.ne.s32.totalorder %s167, %s168
      %p180 = scmp.eq.s32.totalorder %s22, 1
      %p181 = por %p179, %p180
      %p183 = scmp.ne.s32.totalorder %s168, %s182
      %p184 = scmp.eq.s32.totalorder %s22, 0
      %p185 = por %p183, %p184
      %s186 = ssub.s32 %s16, %s23
      %p187 = scmp.eq.s32.totalorder %s186, 0
      %s189 = sadd.s32 %s188, 1
      %s190 = scalar_select %p187, %s188, %s189
      %p193 = pneg %p187
      %p194 = scmp.eq.s32.totalorder %s16, 1
      %p195 = por %p193, %p194
      %p196 = scmp.ne.s32.totalorder %s188, %s191
      %p197 = scmp.eq.s32.totalorder %s16, 0
      %p198 = por %p196, %p197
      %p199 = scmp.ne.s32.totalorder %s188, %s191
      %p200 = scmp.eq.s32.totalorder %s21, 1
      %p201 = por %p199, %p200
      %p202 = scmp.ne.s32.totalorder %s191, %s192
      %p203 = scmp.eq.s32.totalorder %s21, 0
      %p204 = por %p202, %p203
      %p205 = scmp.ne.s32.totalorder %s191, %s192
      %p206 = scmp.eq.s32.totalorder %s22, 1
      %p207 = por %p205, %p206
      %p209 = scmp.ne.s32.totalorder %s192, %s208
      %p210 = scmp.eq.s32.totalorder %s22, 0
      %p211 = por %p209, %p210
      %p212 = scmp.le.s32.totalorder 1, %s16
      %p213 = scmp.lt.s32.totalorder %s16, 3
      %p214 = pnand %p212, %p213
      %p215 = pneg %p214
      // Predicated region
      $region9: #{tpu_custom_call.1} parent=5 // pred_check
        _
      $region10: #{tpu_custom_call.1} parent=5 // pred_check_branch
        %217 = sbr.rel (%p214) target = $region12
      $region11: #{tpu_custom_call.1} parent=5 // pred_region
        %s218 = ssub.s32 %s16, 1
        // Predicated region
        $region13: #{tpu_custom_call.1} parent=11 // pred_check
          %p219 = pneg %p115
        $region14: #{tpu_custom_call.1} parent=11 // pred_check_branch
          %221 = sbr.rel (%p219) target = $region16
        $region15: #{tpu_custom_call.1} parent=11 // pred_region
          _
        $region16: #{tpu_custom_call.1} parent=11 // pred_fallthru
          _
        // Predicated region
        $region17: #{tpu_custom_call.1} parent=11 // pred_check
          %p222 = pneg %p136
        $region18: #{tpu_custom_call.1} parent=11 // pred_check_branch
          %224 = sbr.rel (%p222) target = $region20
        $region19: #{tpu_custom_call.1} parent=11 // pred_region
          _
        $region20: #{tpu_custom_call.1} parent=11 // pred_fallthru
          _
        // Predicated region
        $region21: #{tpu_custom_call.1} parent=11 // pred_check
          %p225 = pneg %p157
        $region22: #{tpu_custom_call.1} parent=11 // pred_check_branch
          %227 = sbr.rel (%p225) target = $region24
        $region23: #{tpu_custom_call.1} parent=11 // pred_region
          _
        $region24: #{tpu_custom_call.1} parent=11 // pred_fallthru
          _
        // Predicated region
        $region25: #{tpu_custom_call.1} parent=11 // pred_check
          %p228 = pneg %p178
        $region26: #{tpu_custom_call.1} parent=11 // pred_check_branch
          %230 = sbr.rel (%p228) target = $region28
        $region27: #{tpu_custom_call.1} parent=11 // pred_region
          _
        $region28: #{tpu_custom_call.1} parent=11 // pred_fallthru
          _
      $region12: #{tpu_custom_call.1} parent=5 // pred_fallthru
        _
      %p231 = scmp.lt.s32.totalorder %s16, 2
      // Predicated region
      $region29: #{tpu_custom_call.1} parent=5 // pred_check
        %p232 = pneg %p231
      $region30: #{tpu_custom_call.1} parent=5 // pred_check_branch
        %234 = sbr.rel (%p232) target = $region32
      $region31: #{tpu_custom_call.1} parent=5 // pred_region
        // Predicated region
        $region33: #{tpu_custom_call.1} parent=31 // pred_check
          %p235 = pneg %p36
        $region34: #{tpu_custom_call.1} parent=31 // pred_check_branch
          %237 = sbr.rel (%p235) target = $region36
        $region35: #{tpu_custom_call.1} parent=31 // pred_region
          %p238 = scmp.lt.s32.totalorder %s16, 1
          %s239 = scalar_select %p238, %s16, 1
          %s240 = smul.addr %s239, 4
          %s241 = scalar_lea.vmem %s0, %s240
        $region36: #{tpu_custom_call.1} parent=31 // pred_fallthru
          _
        // Predicated region
        $region37: #{tpu_custom_call.1} parent=31 // pred_check
          %p242 = pneg %p62
        $region38: #{tpu_custom_call.1} parent=31 // pred_check_branch
          %244 = sbr.rel (%p242) target = $region40
        $region39: #{tpu_custom_call.1} parent=31 // pred_region
          %p245 = scmp.lt.s32.totalorder %s16, 1
          %s246 = scalar_select %p245, %s16, 1
          %s247 = smul.addr %s246, 8
          %s248 = scalar_lea.vmem %s1, %s247
        $region40: #{tpu_custom_call.1} parent=31 // pred_fallthru
          _
        // Predicated region
        $region41: #{tpu_custom_call.1} parent=31 // pred_check
          %p249 = pneg %p88
        $region42: #{tpu_custom_call.1} parent=31 // pred_check_branch
          %251 = sbr.rel (%p249) target = $region44
        $region43: #{tpu_custom_call.1} parent=31 // pred_region
          %p252 = scmp.lt.s32.totalorder %s16, 1
          %s253 = scalar_select %p252, %s16, 1
          %s254 = smul.addr %s253, 8
          %s255 = scalar_lea.vmem %s2, %s254
        $region44: #{tpu_custom_call.1} parent=31 // pred_fallthru
          _
      $region32: #{tpu_custom_call.1} parent=5 // pred_fallthru
        _
      %p256 = scmp.le.s32.totalorder 1, %s16
      %p257 = scmp.lt.s32.totalorder %s16, 3
      %p258 = pnand %p256, %p257
      %p259 = pneg %p258
      // Predicated region
      $region45: #{tpu_custom_call.1} parent=5 // pred_check
        _
      $region46: #{tpu_custom_call.1} parent=5 // pred_check_branch
        %261 = sbr.rel (%p258) target = $region48
      $region47: #{tpu_custom_call.1} parent=5 // pred_region
        %s262 = ssub.s32 %s16, 1
        %p263 = scmp.lt.s32.totalorder %s21, 1
        %s264 = scalar_select %p263, %s21, 1
        %s265 = smul.addr %s264, 4
        %s266 = scalar_lea.vmem %s0, %s265
        %p267 = pneg %p42
        %p268 = pneg %p39
        %p269 = scmp.lt.s32.totalorder %s21, 1
        %s270 = scalar_select %p269, %s21, 1
        %s271 = smul.addr %s270, 8
        %s272 = scalar_lea.vmem %s1, %s271
        %p273 = pneg %p68
        %p274 = pneg %p65
        %p275 = scmp.lt.s32.totalorder %s21, 1
        %s276 = scalar_select %p275, %s21, 1
        %s277 = smul.addr %s276, 8
        %s278 = scalar_lea.vmem %s2, %s277
        %p279 = pneg %p94
        %p280 = pneg %p91
        %p281 = pneg %p115
        %p282 = pneg %p112
        %p283 = pneg %p136
        %p284 = pneg %p133
        %p285 = pneg %p157
        %p286 = pneg %p154
        %p287 = pneg %p178
        %p288 = pneg %p175
        %p289 = pneg %p204
        %p290 = pneg %p201
        %s291 = sand.u32 %s191, 1
        %s292 = scalar_lea.sflag [#allocation3], %s291
        %s293 = sand.u32 %s191, 1
        %s294 = smul.addr %s293, 8
        %s295 = scalar_lea.vmem [#allocation2], %s294
        %p296 = scmp.lt.s32.totalorder %s21, 1
        %s297 = scalar_select %p296, %s21, 1
        %s298 = smul.addr %s297, 4
        %s299 = scalar_lea.vmem %s0, %s298
        %p300 = scmp.lt.s32.totalorder %s21, 1
        %s301 = scalar_select %p300, %s21, 1
        %s302 = smul.addr %s301, 8
        %s303 = scalar_lea.vmem %s1, %s302
        %p304 = scmp.lt.s32.totalorder %s21, 1
        %s305 = scalar_select %p304, %s21, 1
        %s306 = smul.addr %s305, 8
        %s307 = scalar_lea.vmem %s2, %s306
        %v309 = vld [vmem:[%s299] sm:$0xf]
        %v310 = vld [vmem:[%s303] sm:$0xff]
        %v311 = vld [vmem:[%s307] sm:$0xff]
        %v312 = vlaneseq
        %v313 = vshrl.u32 %v312, 7
        %v314 = vlaneseq
        %v315 = vand.u32 %v314, 127
        %v316 = vadd.s32 %v315, 4
        %vm317 = vcmp.eq.s32.totalorder %v313, %v316
        %v318 = vsel %vm317, -1.0, 0.0
        %v319 = vadd.s32 %v313, 4
        %vm320 = vcmp.eq.s32.totalorder %v319, %v315
        %v321 = vsel %vm320, 1.0, 0.0
        %v322 = vadd.f32 %v318, %v321
        %vm323 = vcmp.ge.s32.totalorder %v313, %v315
        %v324 = vsel %vm323, 0.0, -1e+30
        %v325 = vld [vmem:[%s4] sm:$0xf]
        %v326 = vld [vmem:[%s4 + $0x4] sm:$0xf]
        %v327 = vld [vmem:[%s4 + $0x8] sm:$0xf]
        %v328 = vld [vmem:[%s4 + $0xc] sm:$0xf]
        %v333 = vunpack.c.l.b16 %v325
        %v334 = vunpack.c.l.b16 %v326
        %v335 = vunpack.c.l.b16 %v327
        %v336 = vunpack.c.l.b16 %v328
        %v337 = vpack.c.b16 %v334, %v333
        %v338 = vpack.c.b16 %v336, %v335
        %vm341 = vcmask 261120
        %v343 = vsel %vm341, %v309, 0
        %345 = vmatpush.bf16.msra.mxu0 0
        %346 = vmatpush.bf16.msra.mxu0 0
        %347 = vmatpush.bf16.msra.mxu0 0
        %348 = vmatpush.bf16.msra.mxu0 0
        %349 = vmatpush.bf16.msra.mxu0 0
        %350 = vmatpush.bf16.msra.mxu0 0
        %351 = vmatpush.bf16.msra.mxu0 %v338
        %352 = vmatpush.bf16.msra.mxu0 %v337
        %353 = vmatmul.bf16.gmra.mxu0 %v343
        %v354 = vpop.f32.mrf.mxu0
        %v355 = vadd.f32 0.0, %v354
        %v356 = vpop.f32.mrf.mxu0
        %357 = vdwg.mxu0
        %v358 = vmul.f32 %v355, %v310
        %vm359 = vcmask 64512
        %v361 = vsel %vm359, %v355, 0
        %363 = vmatpush.msra.mxu0 0.0
        %364 = vmatpush.msra.mxu0 0.0
        %365 = vmatpush.msra.mxu0 0.0
        %366 = vmatpush.msra.mxu0 0.0
        %367 = vmatpush.msra.mxu0 0.0
        %368 = vmatpush.msra.mxu0 0.0
        %369 = vmatpush.msra.mxu0 0.0
        %370 = vmatpush.msra.mxu0 0.0
        %371 = vmatpush.msra.mxu0 0.0
        %372 = vmatpush.msra.mxu0 0.0
        %373 = vmatpush.msra.mxu0 0.0
        %374 = vmatpush.msra.mxu0 0.0
        %375 = vmatpush.msra.mxu0 0.0
        %376 = vmatpush.msra.mxu0 0.0
        %377 = vmatpush.msra.mxu0 0.0
        %378 = vmatpush.msra.mxu0 %v322
        %379 = vmatmul.f32.gmra.mxu0 %v361
        %v380 = vpop.f32.mrf.mxu0
        %v381 = vadd.f32 0.0, %v380
        %382 = vdwg.mxu0
        %v383 = vmul.f32 %v381, %v311
        %v384 = vadd.f32 %v358, %v383
        %v385 = vpack.c.bf16 %v384, %v384
        %v386 = vld [vmem:[%s5] sm:$0xf]
        %v387 = vld [vmem:[%s5 + $0x4] sm:$0xf]
        %v388 = vld [vmem:[%s5 + $0x8] sm:$0xf]
        %v389 = vld [vmem:[%s5 + $0xc] sm:$0xf]
        %v394 = vunpack.c.l.b16 %v386
        %v395 = vunpack.c.l.b16 %v387
        %v396 = vunpack.c.l.b16 %v388
        %v397 = vunpack.c.l.b16 %v389
        %v398 = vpack.c.b16 %v395, %v394
        %v399 = vpack.c.b16 %v397, %v396
        %402 = vmatpush.bf16.msra.mxu0 0
        %403 = vmatpush.bf16.msra.mxu0 0
        %404 = vmatpush.bf16.msra.mxu0 0
        %405 = vmatpush.bf16.msra.mxu0 0
        %406 = vmatpush.bf16.msra.mxu0 0
        %407 = vmatpush.bf16.msra.mxu0 0
        %408 = vmatpush.bf16.msra.mxu0 %v399
        %409 = vmatpush.bf16.msra.mxu0 %v398
        %410 = vmatmul.bf16.gmra.mxu0 %v343
        %v411 = vpop.f32.mrf.mxu0
        %v412 = vadd.f32 0.0, %v411
        %v413 = vpop.f32.mrf.mxu0
        %414 = vdwg.mxu0
        %v415 = vpack.c.bf16 %v412, %v412
        %v416 = vld [vmem:[%s3] sm:$0xf]
        %v417 = vld [vmem:[%s3 + $0x4] sm:$0xf]
        %v418 = vld [vmem:[%s3 + $0x8] sm:$0xf]
        %v419 = vld [vmem:[%s3 + $0xc] sm:$0xf]
        %v424 = vunpack.c.l.b16 %v416
        %v425 = vunpack.c.l.b16 %v417
        %v426 = vunpack.c.l.b16 %v418
        %v427 = vunpack.c.l.b16 %v419
        %v428 = vpack.c.b16 %v425, %v424
        %v429 = vpack.c.b16 %v427, %v426
        %432 = vmatpush.bf16.msra.mxu0 0
        %433 = vmatpush.bf16.msra.mxu0 0
        %434 = vmatpush.bf16.msra.mxu0 0
        %435 = vmatpush.bf16.msra.mxu0 0
        %436 = vmatpush.bf16.msra.mxu0 0
        %437 = vmatpush.bf16.msra.mxu0 0
        %438 = vmatpush.bf16.msra.mxu0 %v429
        %439 = vmatpush.bf16.msra.mxu0 %v428
        %440 = vmatmul.bf16.gmra.mxu0 %v343
        %v441 = vpop.f32.mrf.mxu0
        %v442 = vadd.f32 0.0, %v441
        %v443 = vpop.f32.mrf.mxu0
        %444 = vdwg.mxu0
        %v445 = vmul.f32 %v442, %v310
        %v447 = vsel %vm359, %v442, 0
        %449 = vmatpush.msra.mxu0 0.0
        %450 = vmatpush.msra.mxu0 0.0
        %451 = vmatpush.msra.mxu0 0.0
        %452 = vmatpush.msra.mxu0 0.0
        %453 = vmatpush.msra.mxu0 0.0
        %454 = vmatpush.msra.mxu0 0.0
        %455 = vmatpush.msra.mxu0 0.0
        %456 = vmatpush.msra.mxu0 0.0
        %457 = vmatpush.msra.mxu0 0.0
        %458 = vmatpush.msra.mxu0 0.0
        %459 = vmatpush.msra.mxu0 0.0
        %460 = vmatpush.msra.mxu0 0.0
        %461 = vmatpush.msra.mxu0 0.0
        %462 = vmatpush.msra.mxu0 0.0
        %463 = vmatpush.msra.mxu0 0.0
        %464 = vmatpush.msra.mxu0 %v322
        %465 = vmatmul.f32.gmra.mxu0 %v447
        %v466 = vpop.f32.mrf.mxu0
        %v467 = vadd.f32 0.0, %v466
        %468 = vdwg.mxu0
        %v469 = vmul.f32 %v467, %v311
        %v470 = vadd.f32 %v445, %v469
        %v471 = vpack.c.bf16 %v470, %v470
        %v473 = vsel %vm359, %v471, 0
        %v476 = vsel %vm359, %v385, 0
        %478 = vmatpush.bf16.xpose.msra.mxu0 0
        %479 = vmatpush.bf16.xpose.msra.mxu0 0
        %480 = vmatpush.bf16.xpose.msra.mxu0 0
        %481 = vmatpush.bf16.xpose.msra.mxu0 0
        %482 = vmatpush.bf16.xpose.msra.mxu0 0
        %483 = vmatpush.bf16.xpose.msra.mxu0 0
        %484 = vmatpush.bf16.xpose.msra.mxu0 0
        %485 = vmatpush.bf16.xpose.msra.mxu0 %v476
        %486 = vmatmul.bf16.gmra.mxu0 %v473
        %v487 = vpop.f32.mrf.mxu0
        %v488 = vadd.f32 %v324, %v487
        %v489 = vpop.f32.mrf.mxu0
        %490 = vdwg.mxu0
        %v491 = vsel %vm359, %v488, -inf
        %492 = vmax.xlane.f32.xlu0 %v491
        %v493 = vpop.xlane.xlu0 %492
        %v494 = vsub.f32 %v488, %v493
        %v495 = vmul.f32 %v494, 1.442695
        %v496 = vpow.pop %v495
        %v497 = vsel %vm359, %v496, 0.0
        %498 = vadd.xlane.f32.xlu0 %v497
        %v499 = vpop.xlane.xlu0 %498
        %v500 = vrcp.pop %v499
        %v501 = vmul.f32 %v496, %v500
        %v502 = vpack.c.bf16 %v501, %v501
        %v504 = vsel %vm359, %v502, 0
        %vm506 = vcmask 1043456
        %v508 = vsel %vm506, %v415, 0
        %510 = vmatpush.bf16.msra.mxu0 0
        %511 = vmatpush.bf16.msra.mxu0 0
        %512 = vmatpush.bf16.msra.mxu0 0
        %513 = vmatpush.bf16.msra.mxu0 0
        %514 = vmatpush.bf16.msra.mxu0 0
        %515 = vmatpush.bf16.msra.mxu0 0
        %516 = vmatpush.bf16.msra.mxu0 0
        %517 = vmatpush.bf16.msra.mxu0 %v508
        %518 = vmatmul.bf16.gmra.mxu0 %v504
        %v519 = vpop.f32.mrf.mxu0
        %v520 = vadd.f32 0.0, %v519
        %v521 = vpop.f32.mrf.mxu0
        %522 = vdwg.mxu0
        %v523 = vpack.c.bf16 %v520, %v520
        %v524 = vld [vmem:[%s6] sm:$0xf]
        %s525 = scalar_lea.vmem %s3, 16
        %v526 = vld [vmem:[%s525] sm:$0xf]
        %v527 = vld [vmem:[%s525 + $0x4] sm:$0xf]
        %v528 = vld [vmem:[%s525 + $0x8] sm:$0xf]
        %v529 = vld [vmem:[%s525 + $0xc] sm:$0xf]
        %v534 = vunpack.c.l.b16 %v526
        %v535 = vunpack.c.l.b16 %v527
        %v536 = vunpack.c.l.b16 %v528
        %v537 = vunpack.c.l.b16 %v529
        %v538 = vpack.c.b16 %v535, %v534
        %v539 = vpack.c.b16 %v537, %v536
        %542 = vmatpush.bf16.msra.mxu0 0
        %543 = vmatpush.bf16.msra.mxu0 0
        %544 = vmatpush.bf16.msra.mxu0 0
        %545 = vmatpush.bf16.msra.mxu0 0
        %546 = vmatpush.bf16.msra.mxu0 0
        %547 = vmatpush.bf16.msra.mxu0 0
        %548 = vmatpush.bf16.msra.mxu0 %v539
        %549 = vmatpush.bf16.msra.mxu0 %v538
        %550 = vmatmul.bf16.gmra.mxu0 %v343
        %v551 = vpop.f32.mrf.mxu0
        %v552 = vadd.f32 0.0, %v551
        %v553 = vpop.f32.mrf.mxu0
        %554 = vdwg.mxu0
        %v555 = vmul.f32 %v552, %v310
        %v557 = vsel %vm359, %v552, 0
        %559 = vmatpush.msra.mxu0 0.0
        %560 = vmatpush.msra.mxu0 0.0
        %561 = vmatpush.msra.mxu0 0.0
        %562 = vmatpush.msra.mxu0 0.0
        %563 = vmatpush.msra.mxu0 0.0
        %564 = vmatpush.msra.mxu0 0.0
        %565 = vmatpush.msra.mxu0 0.0
        %566 = vmatpush.msra.mxu0 0.0
        %567 = vmatpush.msra.mxu0 0.0
        %568 = vmatpush.msra.mxu0 0.0
        %569 = vmatpush.msra.mxu0 0.0
        %570 = vmatpush.msra.mxu0 0.0
        %571 = vmatpush.msra.mxu0 0.0
        %572 = vmatpush.msra.mxu0 0.0
        %573 = vmatpush.msra.mxu0 0.0
        %574 = vmatpush.msra.mxu0 %v322
        %575 = vmatmul.f32.gmra.mxu0 %v557
        %v576 = vpop.f32.mrf.mxu0
        %v577 = vadd.f32 0.0, %v576
        %578 = vdwg.mxu0
        %v579 = vmul.f32 %v577, %v311
        %v580 = vadd.f32 %v555, %v579
        %v581 = vpack.c.bf16 %v580, %v580
        %v583 = vsel %vm359, %v581, 0
        %585 = vmatpush.bf16.xpose.msra.mxu0 0
        %586 = vmatpush.bf16.xpose.msra.mxu0 0
        %587 = vmatpush.bf16.xpose.msra.mxu0 0
        %588 = vmatpush.bf16.xpose.msra.mxu0 0
        %589 = vmatpush.bf16.xpose.msra.mxu0 0
        %590 = vmatpush.bf16.xpose.msra.mxu0 0
        %591 = vmatpush.bf16.xpose.msra.mxu0 0
        %592 = vmatpush.bf16.xpose.msra.mxu0 %v476
        %593 = vmatmul.bf16.gmra.mxu0 %v583
        %v594 = vpop.f32.mrf.mxu0
        %v595 = vadd.f32 %v324, %v594
        %v596 = vpop.f32.mrf.mxu0
        %597 = vdwg.mxu0
        %v598 = vsel %vm359, %v595, -inf
        %599 = vmax.xlane.f32.xlu0 %v598
        %v600 = vpop.xlane.xlu0 %599
        %v601 = vsub.f32 %v595, %v600
        %v602 = vmul.f32 %v601, 1.442695
        %v603 = vpow.pop %v602
        %v604 = vsel %vm359, %v603, 0.0
        %605 = vadd.xlane.f32.xlu0 %v604
        %v606 = vpop.xlane.xlu0 %605
        %v607 = vrcp.pop %v606
        %v608 = vmul.f32 %v603, %v607
        %v609 = vpack.c.bf16 %v608, %v608
        %v611 = vsel %vm359, %v609, 0
        %613 = vmatpush.bf16.msra.mxu0 0
        %614 = vmatpush.bf16.msra.mxu0 0
        %615 = vmatpush.bf16.msra.mxu0 0
        %616 = vmatpush.bf16.msra.mxu0 0
        %617 = vmatpush.bf16.msra.mxu0 0
        %618 = vmatpush.bf16.msra.mxu0 0
        %619 = vmatpush.bf16.msra.mxu0 0
        %620 = vmatpush.bf16.msra.mxu0 %v508
        %621 = vmatmul.bf16.gmra.mxu0 %v611
        %v622 = vpop.f32.mrf.mxu0
        %v623 = vadd.f32 0.0, %v622
        %v624 = vpop.f32.mrf.mxu0
        %625 = vdwg.mxu0
        %v626 = vpack.c.bf16 %v623, %v623
        %s627 = scalar_lea.vmem %s6, 4
        %v628 = vld [vmem:[%s627] sm:$0xf]
        %v630 = vsel %vm359, %v626, 0
        %v633 = vsel %vm506, %v628, 0
        %635 = vmatpush.bf16.msra.mxu0 0
        %636 = vmatpush.bf16.msra.mxu0 0
        %637 = vmatpush.bf16.msra.mxu0 0
        %638 = vmatpush.bf16.msra.mxu0 0
        %639 = vmatpush.bf16.msra.mxu0 0
        %640 = vmatpush.bf16.msra.mxu0 0
        %641 = vmatpush.bf16.msra.mxu0 0
        %642 = vmatpush.bf16.msra.mxu0 %v633
        %643 = vmatmul.bf16.gmra.mxu0 %v630
        %v644 = vpop.f32.mrf.mxu0
        %v645 = vadd.f32 0.0, %v644
        %v646 = vpop.f32.mrf.mxu0
        %647 = vdwg.mxu0
        %v649 = vsel %vm359, %v523, 0
        %v652 = vsel %vm506, %v524, 0
        %654 = vmatpush.bf16.msra.mxu0 0
        %655 = vmatpush.bf16.msra.mxu0 0
        %656 = vmatpush.bf16.msra.mxu0 0
        %657 = vmatpush.bf16.msra.mxu0 0
        %658 = vmatpush.bf16.msra.mxu0 0
        %659 = vmatpush.bf16.msra.mxu0 0
        %660 = vmatpush.bf16.msra.mxu0 0
        %661 = vmatpush.bf16.msra.mxu0 %v652
        %662 = vmatmul.bf16.gmra.mxu0 %v649
        %v663 = vpop.f32.mrf.mxu0
        %v664 = vadd.f32 %v645, %v663
        %v665 = vpop.f32.mrf.mxu0
        %666 = vdwg.mxu0
        %s667 = scalar_lea.vmem %s4, 16
        %v668 = vld [vmem:[%s667] sm:$0xf]
        %v669 = vld [vmem:[%s667 + $0x4] sm:$0xf]
        %v670 = vld [vmem:[%s667 + $0x8] sm:$0xf]
        %v671 = vld [vmem:[%s667 + $0xc] sm:$0xf]
        %v676 = vunpack.c.l.b16 %v668
        %v677 = vunpack.c.l.b16 %v669
        %v678 = vunpack.c.l.b16 %v670
        %v679 = vunpack.c.l.b16 %v671
        %v680 = vpack.c.b16 %v677, %v676
        %v681 = vpack.c.b16 %v679, %v678
        %684 = vmatpush.bf16.msra.mxu0 0
        %685 = vmatpush.bf16.msra.mxu0 0
        %686 = vmatpush.bf16.msra.mxu0 0
        %687 = vmatpush.bf16.msra.mxu0 0
        %688 = vmatpush.bf16.msra.mxu0 0
        %689 = vmatpush.bf16.msra.mxu0 0
        %690 = vmatpush.bf16.msra.mxu0 %v681
        %691 = vmatpush.bf16.msra.mxu0 %v680
        %692 = vmatmul.bf16.gmra.mxu0 %v343
        %v693 = vpop.f32.mrf.mxu0
        %v694 = vadd.f32 0.0, %v693
        %v695 = vpop.f32.mrf.mxu0
        %696 = vdwg.mxu0
        %v697 = vmul.f32 %v694, %v310
        %v699 = vsel %vm359, %v694, 0
        %701 = vmatpush.msra.mxu0 0.0
        %702 = vmatpush.msra.mxu0 0.0
        %703 = vmatpush.msra.mxu0 0.0
        %704 = vmatpush.msra.mxu0 0.0
        %705 = vmatpush.msra.mxu0 0.0
        %706 = vmatpush.msra.mxu0 0.0
        %707 = vmatpush.msra.mxu0 0.0
        %708 = vmatpush.msra.mxu0 0.0
        %709 = vmatpush.msra.mxu0 0.0
        %710 = vmatpush.msra.mxu0 0.0
        %711 = vmatpush.msra.mxu0 0.0
        %712 = vmatpush.msra.mxu0 0.0
        %713 = vmatpush.msra.mxu0 0.0
        %714 = vmatpush.msra.mxu0 0.0
        %715 = vmatpush.msra.mxu0 0.0
        %716 = vmatpush.msra.mxu0 %v322
        %717 = vmatmul.f32.gmra.mxu0 %v699
        %v718 = vpop.f32.mrf.mxu0
        %v719 = vadd.f32 0.0, %v718
        %720 = vdwg.mxu0
        %v721 = vmul.f32 %v719, %v311
        %v722 = vadd.f32 %v697, %v721
        %v723 = vpack.c.bf16 %v722, %v722
        %s724 = scalar_lea.vmem %s5, 16
        %v725 = vld [vmem:[%s724] sm:$0xf]
        %v726 = vld [vmem:[%s724 + $0x4] sm:$0xf]
        %v727 = vld [vmem:[%s724 + $0x8] sm:$0xf]
        %v728 = vld [vmem:[%s724 + $0xc] sm:$0xf]
        %v733 = vunpack.c.l.b16 %v725
        %v734 = vunpack.c.l.b16 %v726
        %v735 = vunpack.c.l.b16 %v727
        %v736 = vunpack.c.l.b16 %v728
        %v737 = vpack.c.b16 %v734, %v733
        %v738 = vpack.c.b16 %v736, %v735
        %741 = vmatpush.bf16.msra.mxu0 0
        %742 = vmatpush.bf16.msra.mxu0 0
        %743 = vmatpush.bf16.msra.mxu0 0
        %744 = vmatpush.bf16.msra.mxu0 0
        %745 = vmatpush.bf16.msra.mxu0 0
        %746 = vmatpush.bf16.msra.mxu0 0
        %747 = vmatpush.bf16.msra.mxu0 %v738
        %748 = vmatpush.bf16.msra.mxu0 %v737
        %749 = vmatmul.bf16.gmra.mxu0 %v343
        %v750 = vpop.f32.mrf.mxu0
        %v751 = vadd.f32 0.0, %v750
        %v752 = vpop.f32.mrf.mxu0
        %753 = vdwg.mxu0
        %v754 = vpack.c.bf16 %v751, %v751
        %s755 = scalar_lea.vmem %s3, 32
        %v756 = vld [vmem:[%s755] sm:$0xf]
        %v757 = vld [vmem:[%s755 + $0x4] sm:$0xf]
        %v758 = vld [vmem:[%s755 + $0x8] sm:$0xf]
        %v759 = vld [vmem:[%s755 + $0xc] sm:$0xf]
        %v764 = vunpack.c.l.b16 %v756
        %v765 = vunpack.c.l.b16 %v757
        %v766 = vunpack.c.l.b16 %v758
        %v767 = vunpack.c.l.b16 %v759
        %v768 = vpack.c.b16 %v765, %v764
        %v769 = vpack.c.b16 %v767, %v766
        %772 = vmatpush.bf16.msra.mxu0 0
        %773 = vmatpush.bf16.msra.mxu0 0
        %774 = vmatpush.bf16.msra.mxu0 0
        %775 = vmatpush.bf16.msra.mxu0 0
        %776 = vmatpush.bf16.msra.mxu0 0
        %777 = vmatpush.bf16.msra.mxu0 0
        %778 = vmatpush.bf16.msra.mxu0 %v769
        %779 = vmatpush.bf16.msra.mxu0 %v768
        %780 = vmatmul.bf16.gmra.mxu0 %v343
        %v781 = vpop.f32.mrf.mxu0
        %v782 = vadd.f32 0.0, %v781
        %v783 = vpop.f32.mrf.mxu0
        %784 = vdwg.mxu0
        %v785 = vmul.f32 %v782, %v310
        %v787 = vsel %vm359, %v782, 0
        %789 = vmatpush.msra.mxu0 0.0
        %790 = vmatpush.msra.mxu0 0.0
        %791 = vmatpush.msra.mxu0 0.0
        %792 = vmatpush.msra.mxu0 0.0
        %793 = vmatpush.msra.mxu0 0.0
        %794 = vmatpush.msra.mxu0 0.0
        %795 = vmatpush.msra.mxu0 0.0
        %796 = vmatpush.msra.mxu0 0.0
        %797 = vmatpush.msra.mxu0 0.0
        %798 = vmatpush.msra.mxu0 0.0
        %799 = vmatpush.msra.mxu0 0.0
        %800 = vmatpush.msra.mxu0 0.0
        %801 = vmatpush.msra.mxu0 0.0
        %802 = vmatpush.msra.mxu0 0.0
        %803 = vmatpush.msra.mxu0 0.0
        %804 = vmatpush.msra.mxu0 %v322
        %805 = vmatmul.f32.gmra.mxu0 %v787
        %v806 = vpop.f32.mrf.mxu0
        %v807 = vadd.f32 0.0, %v806
        %808 = vdwg.mxu0
        %v809 = vmul.f32 %v807, %v311
        %v810 = vadd.f32 %v785, %v809
        %v811 = vpack.c.bf16 %v810, %v810
        %v813 = vsel %vm359, %v811, 0
        %v816 = vsel %vm359, %v723, 0
        %818 = vmatpush.bf16.xpose.msra.mxu0 0
        %819 = vmatpush.bf16.xpose.msra.mxu0 0
        %820 = vmatpush.bf16.xpose.msra.mxu0 0
        %821 = vmatpush.bf16.xpose.msra.mxu0 0
        %822 = vmatpush.bf16.xpose.msra.mxu0 0
        %823 = vmatpush.bf16.xpose.msra.mxu0 0
        %824 = vmatpush.bf16.xpose.msra.mxu0 0
        %825 = vmatpush.bf16.xpose.msra.mxu0 %v816
        %826 = vmatmul.bf16.gmra.mxu0 %v813
        %v827 = vpop.f32.mrf.mxu0
        %v828 = vadd.f32 %v324, %v827
        %v829 = vpop.f32.mrf.mxu0
        %830 = vdwg.mxu0
        %v831 = vsel %vm359, %v828, -inf
        %832 = vmax.xlane.f32.xlu0 %v831
        %v833 = vpop.xlane.xlu0 %832
        %v834 = vsub.f32 %v828, %v833
        %v835 = vmul.f32 %v834, 1.442695
        %v836 = vpow.pop %v835
        %v837 = vsel %vm359, %v836, 0.0
        %838 = vadd.xlane.f32.xlu0 %v837
        %v839 = vpop.xlane.xlu0 %838
        %v840 = vrcp.pop %v839
        %v841 = vmul.f32 %v836, %v840
        %v842 = vpack.c.bf16 %v841, %v841
        %v844 = vsel %vm359, %v842, 0
        %v847 = vsel %vm506, %v754, 0
        %849 = vmatpush.bf16.msra.mxu0 0
        %850 = vmatpush.bf16.msra.mxu0 0
        %851 = vmatpush.bf16.msra.mxu0 0
        %852 = vmatpush.bf16.msra.mxu0 0
        %853 = vmatpush.bf16.msra.mxu0 0
        %854 = vmatpush.bf16.msra.mxu0 0
        %855 = vmatpush.bf16.msra.mxu0 0
        %856 = vmatpush.bf16.msra.mxu0 %v847
        %857 = vmatmul.bf16.gmra.mxu0 %v844
        %v858 = vpop.f32.mrf.mxu0
        %v859 = vadd.f32 0.0, %v858
        %v860 = vpop.f32.mrf.mxu0
        %861 = vdwg.mxu0
        %v862 = vpack.c.bf16 %v859, %v859
        %s863 = scalar_lea.vmem %s6, 8
        %v864 = vld [vmem:[%s863] sm:$0xf]
        %v866 = vsel %vm359, %v862, 0
        %v869 = vsel %vm506, %v864, 0
        %871 = vmatpush.bf16.msra.mxu0 0
        %872 = vmatpush.bf16.msra.mxu0 0
        %873 = vmatpush.bf16.msra.mxu0 0
        %874 = vmatpush.bf16.msra.mxu0 0
        %875 = vmatpush.bf16.msra.mxu0 0
        %876 = vmatpush.bf16.msra.mxu0 0
        %877 = vmatpush.bf16.msra.mxu0 0
        %878 = vmatpush.bf16.msra.mxu0 %v869
        %879 = vmatmul.bf16.gmra.mxu0 %v866
        %v880 = vpop.f32.mrf.mxu0
        %v881 = vadd.f32 0.0, %v880
        %v882 = vpop.f32.mrf.mxu0
        %883 = vdwg.mxu0
        %v884 = vadd.f32 %v664, %v881
        %s885 = scalar_lea.vmem %s3, 48
        %v886 = vld [vmem:[%s885] sm:$0xf]
        %v887 = vld [vmem:[%s885 + $0x4] sm:$0xf]
        %v888 = vld [vmem:[%s885 + $0x8] sm:$0xf]
        %v889 = vld [vmem:[%s885 + $0xc] sm:$0xf]
        %v894 = vunpack.c.l.b16 %v886
        %v895 = vunpack.c.l.b16 %v887
        %v896 = vunpack.c.l.b16 %v888
        %v897 = vunpack.c.l.b16 %v889
        %v898 = vpack.c.b16 %v895, %v894
        %v899 = vpack.c.b16 %v897, %v896
        %902 = vmatpush.bf16.msra.mxu0 0
        %903 = vmatpush.bf16.msra.mxu0 0
        %904 = vmatpush.bf16.msra.mxu0 0
        %905 = vmatpush.bf16.msra.mxu0 0
        %906 = vmatpush.bf16.msra.mxu0 0
        %907 = vmatpush.bf16.msra.mxu0 0
        %908 = vmatpush.bf16.msra.mxu0 %v899
        %909 = vmatpush.bf16.msra.mxu0 %v898
        %910 = vmatmul.bf16.gmra.mxu0 %v343
        %v911 = vpop.f32.mrf.mxu0
        %v912 = vadd.f32 0.0, %v911
        %v913 = vpop.f32.mrf.mxu0
        %914 = vdwg.mxu0
        %v915 = vmul.f32 %v912, %v310
        %v917 = vsel %vm359, %v912, 0
        %919 = vmatpush.msra.mxu0 0.0
        %920 = vmatpush.msra.mxu0 0.0
        %921 = vmatpush.msra.mxu0 0.0
        %922 = vmatpush.msra.mxu0 0.0
        %923 = vmatpush.msra.mxu0 0.0
        %924 = vmatpush.msra.mxu0 0.0
        %925 = vmatpush.msra.mxu0 0.0
        %926 = vmatpush.msra.mxu0 0.0
        %927 = vmatpush.msra.mxu0 0.0
        %928 = vmatpush.msra.mxu0 0.0
        %929 = vmatpush.msra.mxu0 0.0
        %930 = vmatpush.msra.mxu0 0.0
        %931 = vmatpush.msra.mxu0 0.0
        %932 = vmatpush.msra.mxu0 0.0
        %933 = vmatpush.msra.mxu0 0.0
        %934 = vmatpush.msra.mxu0 %v322
        %935 = vmatmul.f32.gmra.mxu0 %v917
        %v936 = vpop.f32.mrf.mxu0
        %v937 = vadd.f32 0.0, %v936
        %938 = vdwg.mxu0
        %v939 = vmul.f32 %v937, %v311
        %v940 = vadd.f32 %v915, %v939
        %v941 = vpack.c.bf16 %v940, %v940
        %v943 = vsel %vm359, %v941, 0
        %945 = vmatpush.bf16.xpose.msra.mxu0 0
        %946 = vmatpush.bf16.xpose.msra.mxu0 0
        %947 = vmatpush.bf16.xpose.msra.mxu0 0
        %948 = vmatpush.bf16.xpose.msra.mxu0 0
        %949 = vmatpush.bf16.xpose.msra.mxu0 0
        %950 = vmatpush.bf16.xpose.msra.mxu0 0
        %951 = vmatpush.bf16.xpose.msra.mxu0 0
        %952 = vmatpush.bf16.xpose.msra.mxu0 %v816
        %953 = vmatmul.bf16.gmra.mxu0 %v943
        %v954 = vpop.f32.mrf.mxu0
        %v955 = vadd.f32 %v324, %v954
        %v956 = vpop.f32.mrf.mxu0
        %957 = vdwg.mxu0
        %v958 = vsel %vm359, %v955, -inf
        %959 = vmax.xlane.f32.xlu0 %v958
        %v960 = vpop.xlane.xlu0 %959
        %v961 = vsub.f32 %v955, %v960
        %v962 = vmul.f32 %v961, 1.442695
        %v963 = vpow.pop %v962
        %v964 = vsel %vm359, %v963, 0.0
        %965 = vadd.xlane.f32.xlu0 %v964
        %v966 = vpop.xlane.xlu0 %965
        %v967 = vrcp.pop %v966
        %v968 = vmul.f32 %v963, %v967
        %v969 = vpack.c.bf16 %v968, %v968
        %v971 = vsel %vm359, %v969, 0
        %973 = vmatpush.bf16.msra.mxu0 0
        %974 = vmatpush.bf16.msra.mxu0 0
        %975 = vmatpush.bf16.msra.mxu0 0
        %976 = vmatpush.bf16.msra.mxu0 0
        %977 = vmatpush.bf16.msra.mxu0 0
        %978 = vmatpush.bf16.msra.mxu0 0
        %979 = vmatpush.bf16.msra.mxu0 0
        %980 = vmatpush.bf16.msra.mxu0 %v847
        %981 = vmatmul.bf16.gmra.mxu0 %v971
        %v982 = vpop.f32.mrf.mxu0
        %v983 = vadd.f32 0.0, %v982
        %v984 = vpop.f32.mrf.mxu0
        %985 = vdwg.mxu0
        %v986 = vpack.c.bf16 %v983, %v983
        %s987 = scalar_lea.vmem %s6, 12
        %v988 = vld [vmem:[%s987] sm:$0xf]
        %v990 = vsel %vm359, %v986, 0
        %v993 = vsel %vm506, %v988, 0
        %995 = vmatpush.bf16.msra.mxu0 0
        %996 = vmatpush.bf16.msra.mxu0 0
        %997 = vmatpush.bf16.msra.mxu0 0
        %998 = vmatpush.bf16.msra.mxu0 0
        %999 = vmatpush.bf16.msra.mxu0 0
        %1000 = vmatpush.bf16.msra.mxu0 0
        %1001 = vmatpush.bf16.msra.mxu0 0
        %1002 = vmatpush.bf16.msra.mxu0 %v993
        %1003 = vmatmul.bf16.gmra.mxu0 %v990
        %v1004 = vpop.f32.mrf.mxu0
        %v1005 = vadd.f32 0.0, %v1004
        %v1006 = vpop.f32.mrf.mxu0
        %1007 = vdwg.mxu0
        %v1008 = vadd.f32 %v884, %v1005
        %1009 = vst.msk [vmem:[%s295] sm:$0xff] %vm341, %v1008
        %s1010 = sand.u32 %s191, 1
        %s1011 = scalar_lea.sflag [#allocation3], %s1010
        %s1012 = sand.u32 %s191, 1
        %s1013 = smul.addr %s1012, 8
        %s1014 = scalar_lea.vmem [#allocation2], %s1013
        // Predicated region
        $region49: #{tpu_custom_call.1} parent=47 // pred_check
          %p1015 = pneg %p201
        $region50: #{tpu_custom_call.1} parent=47 // pred_check_branch
          %1017 = sbr.rel (%p1015) target = $region52
        $region51: #{tpu_custom_call.1} parent=47 // pred_region
          %1019 = vsyncadd %s1011, 0
          %s1020 = smul.addr %s21, 8
          %s1021 = scalar_lea.hbm %s7, %s1020
          %s1023 = sshll.u32 %s1014, 4
          %s1024 = int_to_ptr.vmem [resolvable:$true] %s1023
          %s1025 = sshll.u32 %s1021, 4
          %s1026 = int_to_ptr.hbm [resolvable:$true] %s1025
          %1028 = dma.vmem_to_hbm [thread:$0]  %s1024, 128, %s1026, %s1011
        $region52: #{tpu_custom_call.1} parent=47 // pred_fallthru
          _
      $region48: #{tpu_custom_call.1} parent=5 // pred_fallthru
        _
      %p1029 = scmp.le.s32.totalorder 2, %s16
      // Predicated region
      $region53: #{tpu_custom_call.1} parent=5 // pred_check
        %p1030 = pneg %p1029
      $region54: #{tpu_custom_call.1} parent=5 // pred_check_branch
        %1032 = sbr.rel (%p1030) target = $region56
      $region55: #{tpu_custom_call.1} parent=5 // pred_region
        %s1033 = ssub.s32 %s16, 2
        // Predicated region
        $region57: #{tpu_custom_call.1} parent=55 // pred_check
          %p1034 = pneg %p207
        $region58: #{tpu_custom_call.1} parent=55 // pred_check_branch
          %1036 = sbr.rel (%p1034) target = $region60
        $region59: #{tpu_custom_call.1} parent=55 // pred_region
          %s1037 = sand.u32 %s192, 1
          %s1038 = scalar_lea.sflag [#allocation3], %s1037
          %s1039 = sand.u32 %s192, 1
          %s1040 = smul.addr %s1039, 8
          %s1041 = scalar_lea.vmem [#allocation2], %s1040
          %1043 = dma.done %s1038, 128
        $region60: #{tpu_custom_call.1} parent=55 // pred_fallthru
          _
      $region56: #{tpu_custom_call.1} parent=5 // pred_fallthru
        _
    $region6: #{tpu_custom_call.1} parent=1 // loop_footer
      %s20 = sadd.s32 1, %s16
    $region7: #{tpu_custom_call.1} parent=1 // loop_footer_branch
      %15 = sbr.rel target = $region3
    $region8: #{tpu_custom_call.1} parent=1 // loop_exit
      _
    %1044 = vsyncpa [#allocation3], 1
    %s1045 = scalar_lea.sflag [#allocation3], 1
    %1046 = vsyncpa %s1045, 1

</llo_original>
